<compile_context>
chip_gen: v7x
topology: tpu7x:2x2x1
jax: 0.10.0
libtpu: 0.0.40
codegen_flags: <defaults>
</compile_context>

<pallas_src>
import math

import jax
import jax.numpy as jnp
from jax.experimental import pallas as pl
from jax.experimental.pallas import tpu as pltpu

_LANES = (512, 256, 128)       # preferred lane-dense last dims (dense, unmasked vst)
_MAX_TILE_ROWS = 512           # 512 x 512 f32 = 1 MiB per block buffer (two-pass path)
_TILE_ROW_CANDIDATES = (512, 256, 128, 64, 32, 16, 8)
_FUSED_LIMIT_ELEMS = 512 * 1024  # <= 2 MiB per array -> fused single-call path


# ---------------------------------------------------------------------------
# Kernels
# ---------------------------------------------------------------------------

def _awgn_fused_kernel(x_ref, n_ref, y_ref):
    """Whole (unpadded) tensor resident in VMEM: normalizer + apply in one pass."""
    x = x_ref[...]
    total = jnp.float32(x_ref.shape[0] * x_ref.shape[1])
    normalizer = jnp.sqrt(jnp.sum(x * x) / total)
    inv = 1.0 / normalizer          # inf for an all-zero input -> NaNs, like torch
    y_ref[...] = (x * inv + n_ref[...]) * normalizer


def _sumsq_partial_kernel(x_ref, part_ref):
    """Per-tile sum of squares -> one scalar per grid step (megacore friendly)."""
    x = x_ref[...]
    part_ref[...] = jnp.sum(x * x).reshape(1, 1, 1)


def _awgn_apply_kernel(scal_ref, x_ref, n_ref, y_ref):
    """yhat = (x * (1/normalizer) + n) * normalizer, streaming elementwise."""
    s = scal_ref[...]               # (1, 2): [normalizer, 1/normalizer]
    y_ref[...] = (x_ref[...] * s[0, 1] + n_ref[...]) * s[0, 0]


# ---------------------------------------------------------------------------
# Layout / dispatch
# ---------------------------------------------------------------------------

def _layout(total):
    """Pick (lane, padded_rows, tile_rows, fused) for a flat element count."""
    lane = next((l for l in _LANES if total % l == 0), 128)
    if total % lane == 0:
        rows = total // lane
        if rows * lane <= _FUSED_LIMIT_ELEMS:
            return lane, rows, rows, True                      # fused, no pad
        tile_rows = next((t for t in _TILE_ROW_CANDIDATES if rows % t == 0), None)
        if tile_rows is not None:
            return lane, rows, tile_rows, False                # tiled, no pad
    # Ragged fallback: pad flat length up to a whole number of tiles.
    # TODO(synk): mask the ragged tail inside the kernels (masked stores)
    # instead of materializing padded copies of x / n / y.
    rows = -(-total // lane)
    tile_rows = _MAX_TILE_ROWS if rows > _MAX_TILE_ROWS else 8
    rows_p = -(-rows // tile_rows) * tile_rows
    return lane, rows_p, tile_rows, False


@jax.jit
def _awgn_forward(x, key, noise_std):
    orig_shape = x.shape
    orig_dtype = x.dtype
    noise_std = jnp.float32(noise_std)

    # Noise drawn with XLA's counter-based RNG in the wrapper: runs on every TPU
    # generation and under the Pallas interpreter, and is independent of tiling.
    # TODO(synk): an in-kernel pltpu.stateful_normal path (bf16 on v6e/v7x) would
    # save one HBM stream but has no CPU/interpret lowering, so it is not used.
    n = noise_std * jax.random.normal(key, orig_shape, dtype=jnp.float32)

    total = 1
    for d in orig_shape:
        total *= d

    xf = x.reshape(total).astype(jnp.float32)
    nf = n.reshape(total)

    lane, rows_p, tile_rows, fused = _layout(total)
    pad = rows_p * lane - total
    if pad:
        xf = jnp.pad(xf, (0, pad))
        nf = jnp.pad(nf, (0, pad))
    x2d = xf.reshape(rows_p, lane)
    n2d = nf.reshape(rows_p, lane)

    if fused:
        # ---- single fused pass (small tensors; both example shapes hit this) ----
        y2d = pl.pallas_call(
            _awgn_fused_kernel,
            out_shape=jax.ShapeDtypeStruct((rows_p, lane), jnp.float32),
            grid=(1,),
            in_specs=[pl.BlockSpec((rows_p, lane), lambda i: (0, 0)),
                      pl.BlockSpec((rows_p, lane), lambda i: (0, 0))],
            out_specs=pl.BlockSpec((rows_p, lane), lambda i: (0, 0)),
            compiler_params=pltpu.CompilerParams(
                dimension_semantics=("arbitrary",)),
        )(x2d, n2d)
    else:
        num_tiles = rows_p // tile_rows

        # ---- pass 1: per-tile sum-of-squares partials ("parallel": both v7x
        #      TensorCores stream x); wrapper sums the few scalars. ----
        partials = pl.pallas_call(
            _sumsq_partial_kernel,
            out_shape=jax.ShapeDtypeStruct((num_tiles, 1, 1), jnp.float32),
            grid=(num_tiles,),
            in_specs=[pl.BlockSpec((tile_rows, lane), lambda i: (i, 0))],
            out_specs=pl.BlockSpec((1, 1, 1), lambda i: (i, 0, 0)),
            compiler_params=pltpu.CompilerParams(
                dimension_semantics=("parallel",)),
        )(x2d)

        # Divide by the TRUE element count (zero padding does not perturb the sum).
        normalizer = jnp.sqrt(jnp.sum(partials) / jnp.float32(total))
        inv = 1.0 / normalizer
        scal = jnp.stack([normalizer, inv]).reshape(1, 2)

        # ---- pass 2: streaming elementwise apply (1 MiB blocks, parallel) ----
        y2d = pl.pallas_call(
            _awgn_apply_kernel,
            out_shape=jax.ShapeDtypeStruct((rows_p, lane), jnp.float32),
            grid=(num_tiles,),
            in_specs=[pl.BlockSpec((1, 2), lambda i: (0, 0)),
                      pl.BlockSpec((tile_rows, lane), lambda i: (i, 0)),
                      pl.BlockSpec((tile_rows, lane), lambda i: (i, 0))],
            out_specs=pl.BlockSpec((tile_rows, lane), lambda i: (i, 0)),
            compiler_params=pltpu.CompilerParams(
                dimension_semantics=("parallel",)),
        )(scal, x2d, n2d)

    if pad:
        yhat = y2d.reshape(-1)[:total].reshape(orig_shape)
    else:
        yhat = y2d.reshape(orig_shape)
    return yhat.astype(orig_dtype), n


class AWGNChannelPallas:
    """JAX/Pallas equivalent of the PyTorch AWGNChannel module."""

    def __init__(self, snrdB=None):
        self.snr = 10.0 ** (snrdB / 10.0) if snrdB is not None else None
        self.n = None

    def __call__(self, inputs, key):
        assert self.snr is not None, "snrdB must be set"
        noise_std = math.sqrt(1.0 / self.snr)
        yhat, n = _awgn_forward(inputs, key, jnp.float32(noise_std))
        self.n = n   # mirrors `self.n` on the torch module (stateful wrapper)
        return yhat


if __name__ == "__main__":
    key = jax.random.PRNGKey(0)
    k_x, k_n, k_x2, k_n2 = jax.random.split(key, 4)

    channel = AWGNChannelPallas(snrdB=10.0)
    target_std = math.sqrt(1.0 / channel.snr)

    # Primary small NCHW input: batch=2, channels=4, spatial=16x16  -> fused path.
    x = jax.random.normal(k_x, (2, 4, 16, 16), dtype=jnp.float32)
    yhat = jax.block_until_ready(channel(x, k_n))
    n = channel.n
    assert yhat.shape == x.shape and yhat.dtype == jnp.float32
    assert n.shape == x.shape

    normalizer = jnp.sqrt(jnp.mean(x ** 2))
    ref = (x / normalizer + n) * normalizer
    assert jnp.allclose(yhat, ref, atol=1e-4, rtol=1e-4)

    # Loose distribution sanity on the noise (2048 samples).
    assert abs(float(jnp.mean(n))) < 0.1
    assert abs(float(jnp.std(n)) - target_std) < 0.1

    # Larger shape to exercise the two-pass tiled path (grid of 4 one-MiB tiles).
    x2 = jax.random.normal(k_x2, (4, 16, 128, 128), dtype=jnp.float32)
    yhat2 = jax.block_until_ready(channel(x2, k_n2))
    n2 = channel.n
    norm2 = jnp.sqrt(jnp.mean(x2 ** 2))
    ref2 = (x2 / norm2 + n2) * norm2
    assert jnp.allclose(yhat2, ref2, atol=1e-4, rtol=1e-4)
    assert abs(float(jnp.mean(n2))) < 0.05
    assert abs(float(jnp.std(n2)) - target_std) < 0.05

    print("KERNEL_OK")
</pallas_src>

<mosaic_0001>
module attributes {stable_mosaic.version = 11 : i64} {
  func.func @_awgn_fused_kernel(%arg0: i32, %arg1: memref<4x512xf32, #tpu.memory_space<vmem>>, %arg2: memref<4x512xf32, #tpu.memory_space<vmem>>, %arg3: memref<4x512xf32, #tpu.memory_space<vmem>>) attributes {dimension_semantics = [#tpu.dimension_semantics<arbitrary>], iteration_bounds = array<i64: 1>, scalar_prefetch = 0 : i64, scratch_operands = 0 : i64, tpu.core_type = #tpu.core_type<tc>, window_params = [{pipeline_mode = #tpu.pipeline_mode<synchronous>, transform_indices = @transform_0, window_bounds = array<i64: 4, 512>}, {pipeline_mode = #tpu.pipeline_mode<synchronous>, transform_indices = @transform_1, window_bounds = array<i64: 4, 512>}, {pipeline_mode = #tpu.pipeline_mode<synchronous>, transform_indices = @transform_2, window_bounds = array<i64: 4, 512>}]} {
    %c0 = arith.constant 0 : index
    %c0_0 = arith.constant 0 : index
    %0 = vector.load %arg1[%c0, %c0_0] : memref<4x512xf32, #tpu.memory_space<vmem>>, vector<4x512xf32>
    %1 = arith.mulf %0, %0 : vector<4x512xf32>
    %2 = vector.shape_cast %1 : vector<4x512xf32> to vector<1x4x512xf32>
    %cst = arith.constant dense<0.000000e+00> : vector<1xf32>
    %3 = vector.multi_reduction <add>, %2, %cst [1, 2] : vector<1x4x512xf32> to vector<1xf32>
    %4 = vector.shape_cast %3 : vector<1xf32> to vector<1x1x1xf32>
    %5 = vector.extract %4[0, 0, 0] : f32 from vector<1x1x1xf32>
    %cst_1 = arith.constant 2.048000e+03 : f32
    %6 = arith.divf %5, %cst_1 : f32
    %7 = math.sqrt %6 : f32
    %cst_2 = arith.constant 1.000000e+00 : f32
    %8 = arith.divf %cst_2, %7 : f32
    %9 = vector.broadcast %8 : f32 to vector<4x512xf32>
    %10 = arith.mulf %0, %9 : vector<4x512xf32>
    %c0_3 = arith.constant 0 : index
    %c0_4 = arith.constant 0 : index
    %11 = vector.load %arg2[%c0_3, %c0_4] : memref<4x512xf32, #tpu.memory_space<vmem>>, vector<4x512xf32>
    %12 = arith.addf %10, %11 : vector<4x512xf32>
    %13 = vector.broadcast %7 : f32 to vector<4x512xf32>
    %14 = arith.mulf %12, %13 : vector<4x512xf32>
    %c0_5 = arith.constant 0 : index
    %c0_6 = arith.constant 0 : index
    %15 = vector.load %arg3[%c0_5, %c0_6] : memref<4x512xf32, #tpu.memory_space<vmem>>, vector<4x512xf32>
    tpu.vector_store %arg3[%c0_5, %c0_6], %14 {strides = array<i32>} : memref<4x512xf32, #tpu.memory_space<vmem>>, vector<4x512xf32>,
    return
  }
  func.func @transform_0(%arg0: i32) -> (i32, i32) {
    %c0_i32 = arith.constant 0 : i32
    %c0_i32_0 = arith.constant 0 : i32
    %c0_i32_1 = arith.constant 0 : i32
    return %c0_i32, %c0_i32_0 : i32, i32
  }
  func.func @transform_1(%arg0: i32) -> (i32, i32) {
    %c0_i32 = arith.constant 0 : i32
    %c0_i32_0 = arith.constant 0 : i32
    %c0_i32_1 = arith.constant 0 : i32
    return %c0_i32, %c0_i32_0 : i32, i32
  }
  func.func @transform_2(%arg0: i32) -> (i32, i32) {
    %c0_i32 = arith.constant 0 : i32
    %c0_i32_0 = arith.constant 0 : i32
    %c0_i32_1 = arith.constant 0 : i32
    return %c0_i32, %c0_i32_0 : i32, i32
  }
}

</mosaic_0001>

<llo_original>
// kernel: _awgn_forward.1
$region0: #{_awgn_forward.1}
  #allocation0 [shape = 'u32[]', space=smem, size = 0x4, offset = 0x4, fixed_abs, tag = 'smem constant byte address 0x4 - core index']
  #allocation1 [shape = 'u32[144,128]{1,0:T(1,128)}', space=vmem, size = 0x12000, scoped, tag = 'internal scratch']
  %s0 = inlined_call_operand.vmem [shape: f32[4,512], index: 0, kind: input, shape index: {}]
  %s1 = inlined_call_operand.vmem [shape: f32[4,512], index: 1, kind: input, shape index: {}]
  %s2 = inlined_call_operand.vmem [shape: f32[4,512], index: 2, kind: output, shape index: {}]
  %s3 = sld [smem:[#allocation0]]
  $region18: #{_awgn_forward.1} parent=0
    _
  %s5 = ssub.s32 1, %s3
  %s6 = scalar_select 0, %s5, %s3
  // Predicated region
  $region2: #{_awgn_forward.1} parent=0 // pred_check
    _
  $region3: #{_awgn_forward.1} parent=0 // pred_check_branch
    %8 = sbr.rel (0) target = $region5
  $region4: #{_awgn_forward.1} parent=0 // pred_region
    _
  $region5: #{_awgn_forward.1} parent=0 // pred_fallthru
    _
  // Predicated region
  $region6: #{_awgn_forward.1} parent=0 // pred_check
    _
  $region7: #{_awgn_forward.1} parent=0 // pred_check_branch
    %10 = sbr.rel (0) target = $region9
  $region8: #{_awgn_forward.1} parent=0 // pred_region
    _
  $region9: #{_awgn_forward.1} parent=0 // pred_fallthru
    _
  %v11 = vld [vmem:[%s0] sm:$0xff]
  %v12 = vld [vmem:[%s0 + $0x8] sm:$0xff]
  %v13 = vmul.f32 %v11, %v11
  %v14 = vmul.f32 %v12, %v12
  %v17 = vcombine.high %v13, %v13
  %v18 = vcombine.high %v14, %v14
  %vm21 = vcmask 1043456
  %v22 = vsel %vm21, %v13, 0.0
  %v23 = vsel %vm21, %v17, 0.0
  %v24 = vadd.f32 %v22, %v23
  %v25 = vsel %vm21, %v14, 0.0
  %v26 = vadd.f32 %v24, %v25
  %v27 = vsel %vm21, %v18, 0.0
  %v28 = vadd.f32 %v26, %v27
  %29 = vadd.xlane.f32.xlu0 %v28
  %v30 = vpop.xlane.xlu0 %29
  %v31 = vrot.slane %v30, 4
  %v32 = vadd.f32 %v30, %v31
  %v33 = vrot.slane %v32, 2
  %v34 = vadd.f32 %v32, %v33
  %v35 = vrot.slane %v34, 1
  %v36 = vadd.f32 %v34, %v35
  %s37 = vtos %v36
  %v38 = vrcp.pop 2048.0
  %s39 = vtos %v38
  %s40 = smul.f32 %s37, %s39
  %v41 = vstv %s40
  %v42 = vrsqrt.pop %v41
  %v43 = vmul.f32 %v41, %v42
  %vm44 = vcmp.eq.f32.partialorder %v41, inf
  %v45 = vsel %vm44, %v41, %v43
  %vm46 = vcmp.eq.f32.partialorder %v41, 0.0
  %v47 = vand.u32 %v41, 2147483648
  %v48 = vsel %vm46, %v47, %v45
  %s49 = vtos %v48
  %v50 = vstv %s49
  %v51 = vrcp.pop %v50
  %s52 = vtos %v51
  %v53 = vstv %s52
  %v54 = vmul.f32 %v11, %v53
  %v55 = vmul.f32 %v12, %v53
  %v56 = vld [vmem:[%s1] sm:$0xff]
  %v57 = vld [vmem:[%s1 + $0x8] sm:$0xff]
  %v58 = vadd.f32 %v54, %v56
  %v59 = vadd.f32 %v55, %v57
  %v60 = vstv %s49
  %v61 = vmul.f32 %v58, %v60
  %v62 = vmul.f32 %v59, %v60
  %63 = vst [vmem:[%s2] sm:$0xff] %v61
  %64 = vst [vmem:[%s2 + $0x8] sm:$0xff] %v62
  // Predicated region
  $region10: #{_awgn_forward.1} parent=0 // pred_check
    _
  $region11: #{_awgn_forward.1} parent=0 // pred_check_branch
    %66 = sbr.rel (0) target = $region13
  $region12: #{_awgn_forward.1} parent=0 // pred_region
    _
  $region13: #{_awgn_forward.1} parent=0 // pred_fallthru
    _
  // Predicated region
  $region14: #{_awgn_forward.1} parent=0 // pred_check
    _
  $region15: #{_awgn_forward.1} parent=0 // pred_check_branch
    %68 = sbr.rel (0) target = $region17
  $region16: #{_awgn_forward.1} parent=0 // pred_region
    _
  $region17: #{_awgn_forward.1} parent=0 // pred_fallthru
    _

</llo_original>
